<compile_context>
chip_gen: v5e
topology: v5e:2x2
jax: 0.10.0
libtpu: 0.0.40
codegen_flags: <defaults>
</compile_context>

<pallas_src>
import functools

import numpy as np
import jax
import jax.numpy as jnp
from jax.experimental import pallas as pl
from jax.experimental.pallas import tpu as pltpu


@functools.lru_cache(maxsize=None)
def _spectral_operators_np(H, W, m1, m2):
    """Stacked real truncated-DFT operators (numpy, cached per shape).

    fwd: (H*W, 2*m1*m2) so that x_flat @ fwd = [Re(X_ft) | Im(X_ft)] over the
         kept (m1, m2) modes.
    inv: (2*m1*m2, H*W) so that [Yr | Yi] @ inv = real(ifft2(zero-padded Y)),
         with the 1/(H*W) normalization folded in.
    """
    h = np.arange(H)[:, None]
    w = np.arange(W)[:, None]
    k1 = np.arange(m1)[None, :]
    k2 = np.arange(m2)[None, :]

    a1 = 2.0 * np.pi * h * k1 / H          # (H, m1)
    a2 = 2.0 * np.pi * w * k2 / W          # (W, m2)

    # Forward DFT factors exp(-i a1), exp(-i a2)
    e1r, e1i = np.cos(a1), -np.sin(a1)
    e2r, e2i = np.cos(a2), -np.sin(a2)
    fwd_re = np.kron(e1r, e2r) - np.kron(e1i, e2i)   # (H*W, m1*m2)
    fwd_im = np.kron(e1r, e2i) + np.kron(e1i, e2r)   # (H*W, m1*m2)
    fwd = np.concatenate([fwd_re, fwd_im], axis=1)   # (H*W, 2*m1*m2)

    # Inverse DFT factors exp(+i a1), exp(+i a2); real part only, 1/(HW) folded.
    d1r, d1i = np.cos(a1), np.sin(a1)
    d2r, d2i = np.cos(a2), np.sin(a2)
    inv_re = np.kron(d1r, d2r) - np.kron(d1i, d2i)
    inv_im = np.kron(d1r, d2i) + np.kron(d1i, d2r)
    inv = np.concatenate([inv_re.T, -inv_im.T], axis=0) / float(H * W)

    return fwd, inv


def _choose_row_tile(BC, C, target=256):
    """Row tile TM: divides BC, multiple of C (so every tile sees the same
    channel-cycling weight pattern) and of the sublane quantum; <= target when
    possible, else the full slab."""
    if BC <= target:
        return BC
    best = None
    t = C
    while t <= target:
        if BC % t == 0 and t % 8 == 0:
            best = t
        t += C
    return best if best is not None else BC


def _fourier_kernel(x_ref, w_ref, fwd_ref, inv_ref, o_ref):
    # x_ref : (TM, HW)  bf16 row tile of the (B*C, H*W) slab
    # w_ref : (TM, M2)  bf16 channel-cycling weights [w | w]   (resident)
    # fwd_ref: (HW, M2) bf16 forward truncated-DFT operator    (resident)
    # inv_ref: (M2, HW) bf16 inverse operator, 1/(HW) folded   (resident)
    g = jnp.dot(x_ref[...], fwd_ref[...],
                preferred_element_type=jnp.float32)          # [Re(X_ft)|Im(X_ft)]
    y = (g * w_ref[...].astype(jnp.float32)).astype(jnp.bfloat16)
    o_ref[...] = jnp.dot(y, inv_ref[...],
                         preferred_element_type=jnp.float32).astype(o_ref.dtype)


@functools.partial(jax.jit, static_argnames=("modes1", "modes2"))
def fourier_layer_2d(x, weights, *, modes1, modes2):
    """x: (B, C, H, W) f32; weights: (1, C, m1, m2) f32 (in_ch == out_ch)."""
    B, C, H, W = x.shape
    m1, m2 = modes1, modes2
    BC, HW, M2 = B * C, H * W, 2 * m1 * m2

    fwd_np, inv_np = _spectral_operators_np(H, W, m1, m2)
    fwd = jnp.asarray(fwd_np, dtype=jnp.bfloat16)          # (HW, M2)
    inv = jnp.asarray(inv_np, dtype=jnp.bfloat16)          # (M2, HW)

    TM = _choose_row_tile(BC, C)
    assert BC % TM == 0 and TM % C == 0, (BC, C, TM)
    grid = (BC // TM,)

    # Lane-dense slabs; pure row-major reshapes (no transposes).
    x_flat = x.reshape(BC, HW).astype(jnp.bfloat16)

    # Single channel-cycling weight tile (TM, M2): since TM % C == 0 and rows
    # are ordered (b, c) row-major, EVERY row tile uses this exact block, so it
    # is uploaded once and kept resident (no Bx-redundant HBM materialization).
    w_pair = jnp.concatenate([weights.reshape(C, m1 * m2)] * 2, axis=-1)  # (C, M2)
    w_tile = jnp.tile(w_pair, (TM // C, 1)).astype(jnp.bfloat16)          # (TM, M2)

    # Advisory cost estimate for the XLA scheduler.
    itemsize_out = jnp.dtype(x.dtype).itemsize
    bytes_accessed = (BC * HW * 2                 # x (bf16)
                      + BC * HW * itemsize_out    # out
                      + 2 * HW * M2 * 2           # fwd + inv (bf16)
                      + TM * M2 * 2)              # weight tile (bf16)
    cost = pl.CostEstimate(flops=4 * BC * HW * M2, transcendentals=0,
                           bytes_accessed=bytes_accessed)

    # Explicit scoped-VMEM budget: resident operators/weights + double-buffered
    # x/out tiles, with headroom; clamped to v7x's 64 MiB physical VMEM.
    resident = 2 * HW * M2 * 2 + TM * M2 * 2
    per_step = TM * HW * 2 + TM * HW * itemsize_out
    vmem_limit = int(min(max(2 * (resident + 2 * per_step), 8 * 1024 * 1024),
                         64 * 1024 * 1024))

    out_flat = pl.pallas_call(
        _fourier_kernel,
        out_shape=jax.ShapeDtypeStruct((BC, HW), x.dtype),
        grid_spec=pltpu.PrefetchScalarGridSpec(
            num_scalar_prefetch=0,
            grid=grid,
            in_specs=[
                pl.BlockSpec((TM, HW), lambda i: (i, 0)),   # x row tile (pipelined)
                pl.BlockSpec((TM, M2), lambda i: (0, 0)),   # weights (resident)
                pl.BlockSpec((HW, M2), lambda i: (0, 0)),   # forward operator (resident)
                pl.BlockSpec((M2, HW), lambda i: (0, 0)),   # inverse operator (resident)
            ],
            out_specs=pl.BlockSpec((TM, HW), lambda i: (i, 0)),
        ),
        compiler_params=pltpu.CompilerParams(
            dimension_semantics=("parallel",),              # v7x: shard rows across TCs
            vmem_limit_bytes=vmem_limit),
        cost_estimate=cost,
    )(x_flat, w_tile, fwd, inv)

    return out_flat.reshape(B, C, H, W)


def fourier_layer_2d_ref(x, weights, modes1, modes2):
    """Pure-JAX reference mirroring the PyTorch forward (eval mode)."""
    x_ft = jnp.fft.fftn(x, axes=(-2, -1))
    out_ft = jnp.zeros_like(x_ft)
    out_ft = out_ft.at[:, :, :modes1, :modes2].set(
        x_ft[:, :, :modes1, :modes2] * weights)
    return jnp.real(jnp.fft.ifftn(out_ft, axes=(-2, -1))).astype(x.dtype)


if __name__ == "__main__":
    B, C, H, W = 2, 4, 16, 16        # in_channels == out_channels == 4
    modes1, modes2 = 8, 8

    key = jax.random.PRNGKey(0)
    kx, kw = jax.random.split(key)
    x = jax.random.normal(kx, (B, C, H, W), dtype=jnp.float32)
    # nn.Parameter(torch.randn(1, out_channels, modes1, modes2) * 0.02)
    weights = jax.random.normal(kw, (1, C, modes1, modes2), dtype=jnp.float32) * 0.02

    out = fourier_layer_2d(x, weights, modes1=modes1, modes2=modes2)
    out = jax.block_until_ready(out)

    ref = fourier_layer_2d_ref(x, weights, modes1, modes2)
    assert out.shape == (B, C, H, W)
    # bf16 operands with f32 accumulation -> loosened tolerance vs f32 path.
    np.testing.assert_allclose(np.asarray(out), np.asarray(ref),
                               rtol=2e-2, atol=2e-3)
    print("KERNEL_OK")
</pallas_src>

<mosaic_0001>
module attributes {stable_mosaic.version = 11 : i64} {
  func.func @_fourier_kernel(%arg0: i32, %arg1: memref<8x256xbf16, #tpu.memory_space<vmem>>, %arg2: memref<8x128xbf16, #tpu.memory_space<vmem>>, %arg3: memref<256x128xbf16, #tpu.memory_space<vmem>>, %arg4: memref<128x256xbf16, #tpu.memory_space<vmem>>, %arg5: memref<8x256xf32, #tpu.memory_space<vmem>>) attributes {dimension_semantics = [#tpu.dimension_semantics<parallel>], iteration_bounds = array<i64: 1>, scalar_prefetch = 0 : i64, scratch_operands = 0 : i64, tpu.core_type = #tpu.core_type<tc>, window_params = [{transform_indices = @transform_0, window_bounds = array<i64: 8, 256>}, {pipeline_mode = #tpu.pipeline_mode<synchronous>, transform_indices = @transform_1, window_bounds = array<i64: 8, 128>}, {pipeline_mode = #tpu.pipeline_mode<synchronous>, transform_indices = @transform_2, window_bounds = array<i64: 256, 128>}, {pipeline_mode = #tpu.pipeline_mode<synchronous>, transform_indices = @transform_3, window_bounds = array<i64: 128, 256>}, {transform_indices = @transform_4, window_bounds = array<i64: 8, 256>}]} {
    %c0 = arith.constant 0 : index
    %c0_0 = arith.constant 0 : index
    %0 = vector.load %arg1[%c0, %c0_0] : memref<8x256xbf16, #tpu.memory_space<vmem>>, vector<8x256xbf16>
    %c0_1 = arith.constant 0 : index
    %c0_2 = arith.constant 0 : index
    %1 = vector.load %arg3[%c0_1, %c0_2] : memref<256x128xbf16, #tpu.memory_space<vmem>>, vector<256x128xbf16>
    %cst = arith.constant dense<0.000000e+00> : vector<8x128xf32>
    %2 = tpu.matmul %0, %1, %cst {dimension_numbers = #tpu.dot_dimension_numbers<[1], [0], [0], [1], [0, 0, 1, 1], [], []>} : vector<8x256xbf16>, vector<256x128xbf16>, vector<8x128xf32> -> vector<8x128xf32>
    %c0_3 = arith.constant 0 : index
    %c0_4 = arith.constant 0 : index
    %3 = vector.load %arg2[%c0_3, %c0_4] : memref<8x128xbf16, #tpu.memory_space<vmem>>, vector<8x128xbf16>
    %4 = arith.extf %3 : vector<8x128xbf16> to vector<8x128xf32>
    %5 = arith.mulf %2, %4 : vector<8x128xf32>
    %6 = arith.truncf %5 : vector<8x128xf32> to vector<8x128xbf16>
    %c0_5 = arith.constant 0 : index
    %c0_6 = arith.constant 0 : index
    %7 = vector.load %arg4[%c0_5, %c0_6] : memref<128x256xbf16, #tpu.memory_space<vmem>>, vector<128x256xbf16>
    %cst_7 = arith.constant dense<0.000000e+00> : vector<8x256xf32>
    %8 = tpu.matmul %6, %7, %cst_7 {dimension_numbers = #tpu.dot_dimension_numbers<[1], [0], [0], [1], [0, 0, 1, 1], [], []>} : vector<8x128xbf16>, vector<128x256xbf16>, vector<8x256xf32> -> vector<8x256xf32>
    %c0_8 = arith.constant 0 : index
    %c0_9 = arith.constant 0 : index
    %9 = vector.load %arg5[%c0_8, %c0_9] : memref<8x256xf32, #tpu.memory_space<vmem>>, vector<8x256xf32>
    tpu.vector_store %arg5[%c0_8, %c0_9], %8 {strides = array<i32>} : memref<8x256xf32, #tpu.memory_space<vmem>>, vector<8x256xf32>,
    return
  }
  func.func @transform_0(%arg0: i32) -> (i32, i32) {
    %c0_i32 = arith.constant 0 : i32
    %c0_i32_0 = arith.constant 0 : i32
    return %arg0, %c0_i32 : i32, i32
  }
  func.func @transform_1(%arg0: i32) -> (i32, i32) {
    %c0_i32 = arith.constant 0 : i32
    %c0_i32_0 = arith.constant 0 : i32
    %c0_i32_1 = arith.constant 0 : i32
    return %c0_i32, %c0_i32_0 : i32, i32
  }
  func.func @transform_2(%arg0: i32) -> (i32, i32) {
    %c0_i32 = arith.constant 0 : i32
    %c0_i32_0 = arith.constant 0 : i32
    %c0_i32_1 = arith.constant 0 : i32
    return %c0_i32, %c0_i32_0 : i32, i32
  }
  func.func @transform_3(%arg0: i32) -> (i32, i32) {
    %c0_i32 = arith.constant 0 : i32
    %c0_i32_0 = arith.constant 0 : i32
    %c0_i32_1 = arith.constant 0 : i32
    return %c0_i32, %c0_i32_0 : i32, i32
  }
  func.func @transform_4(%arg0: i32) -> (i32, i32) {
    %c0_i32 = arith.constant 0 : i32
    %c0_i32_0 = arith.constant 0 : i32
    return %arg0, %c0_i32 : i32, i32
  }
}

</mosaic_0001>

<llo_original>
// kernel: fourier_layer_2d.1
$region0: #{fourier_layer_2d.1}
  #allocation0 [shape = 'u32[]', space=smem, size = 0x4, offset = 0x4, fixed_abs, tag = 'smem constant byte address 0x4 - core index']
  #allocation1 [shape = 'u32[72,128]{1,0:T(1,128)}', space=vmem, size = 0x9000, scoped, tag = 'internal scratch']
  %s0 = inlined_call_operand.vmem [shape: bf16[8,256], index: 0, kind: input, shape index: {}]
  %s1 = inlined_call_operand.vmem [shape: bf16[8,128], index: 1, kind: input, shape index: {}]
  %s2 = inlined_call_operand.vmem [shape: bf16[256,128], index: 2, kind: input, shape index: {}]
  %s3 = inlined_call_operand.vmem [shape: bf16[128,256], index: 3, kind: input, shape index: {}]
  %s4 = inlined_call_operand.vmem [shape: f32[8,256], index: 4, kind: output, shape index: {}]
  %s5 = sld [smem:[#allocation0]]
  $region26: #{fourier_layer_2d.1} parent=0
    _
  %s7 = ssub.s32 1, %s5
  %s8 = scalar_select 0, %s7, %s5
  // Predicated region
  $region2: #{fourier_layer_2d.1} parent=0 // pred_check
    _
  $region3: #{fourier_layer_2d.1} parent=0 // pred_check_branch
    %10 = sbr.rel (0) target = $region5
  $region4: #{fourier_layer_2d.1} parent=0 // pred_region
    _
  $region5: #{fourier_layer_2d.1} parent=0 // pred_fallthru
    _
  // Predicated region
  $region6: #{fourier_layer_2d.1} parent=0 // pred_check
    _
  $region7: #{fourier_layer_2d.1} parent=0 // pred_check_branch
    %12 = sbr.rel (0) target = $region9
  $region8: #{fourier_layer_2d.1} parent=0 // pred_region
    _
  $region9: #{fourier_layer_2d.1} parent=0 // pred_fallthru
    _
  // Predicated region
  $region10: #{fourier_layer_2d.1} parent=0 // pred_check
    _
  $region11: #{fourier_layer_2d.1} parent=0 // pred_check_branch
    %14 = sbr.rel (0) target = $region13
  $region12: #{fourier_layer_2d.1} parent=0 // pred_region
    _
  $region13: #{fourier_layer_2d.1} parent=0 // pred_fallthru
    _
  // Predicated region
  $region14: #{fourier_layer_2d.1} parent=0 // pred_check
    _
  $region15: #{fourier_layer_2d.1} parent=0 // pred_check_branch
    %16 = sbr.rel (0) target = $region17
  $region16: #{fourier_layer_2d.1} parent=0 // pred_region
    _
  $region17: #{fourier_layer_2d.1} parent=0 // pred_fallthru
    _
  %v17 = vld [vmem:[%s0] sm:$0xff]
  %v18 = vld [vmem:[%s2] sm:$0xf]
  %v19 = vld [vmem:[%s2 + $0x4] sm:$0xf]
  %v20 = vld [vmem:[%s2 + $0x8] sm:$0xf]
  %v21 = vld [vmem:[%s2 + $0xc] sm:$0xf]
  %v22 = vld [vmem:[%s2 + $0x10] sm:$0xf]
  %v23 = vld [vmem:[%s2 + $0x14] sm:$0xf]
  %v24 = vld [vmem:[%s2 + $0x18] sm:$0xf]
  %v25 = vld [vmem:[%s2 + $0x1c] sm:$0xf]
  %v26 = vld [vmem:[%s2 + $0x20] sm:$0xf]
  %v27 = vld [vmem:[%s2 + $0x24] sm:$0xf]
  %v28 = vld [vmem:[%s2 + $0x28] sm:$0xf]
  %v29 = vld [vmem:[%s2 + $0x2c] sm:$0xf]
  %v30 = vld [vmem:[%s2 + $0x30] sm:$0xf]
  %v31 = vld [vmem:[%s2 + $0x34] sm:$0xf]
  %v32 = vld [vmem:[%s2 + $0x38] sm:$0xf]
  %v33 = vld [vmem:[%s2 + $0x3c] sm:$0xf]
  %v34 = vld [vmem:[%s2 + $0x40] sm:$0xf]
  %v35 = vld [vmem:[%s2 + $0x44] sm:$0xf]
  %v36 = vld [vmem:[%s2 + $0x48] sm:$0xf]
  %v37 = vld [vmem:[%s2 + $0x4c] sm:$0xf]
  %v38 = vld [vmem:[%s2 + $0x50] sm:$0xf]
  %v39 = vld [vmem:[%s2 + $0x54] sm:$0xf]
  %v40 = vld [vmem:[%s2 + $0x58] sm:$0xf]
  %v41 = vld [vmem:[%s2 + $0x5c] sm:$0xf]
  %v42 = vld [vmem:[%s2 + $0x60] sm:$0xf]
  %v43 = vld [vmem:[%s2 + $0x64] sm:$0xf]
  %v44 = vld [vmem:[%s2 + $0x68] sm:$0xf]
  %v45 = vld [vmem:[%s2 + $0x6c] sm:$0xf]
  %v46 = vld [vmem:[%s2 + $0x70] sm:$0xf]
  %v47 = vld [vmem:[%s2 + $0x74] sm:$0xf]
  %v48 = vld [vmem:[%s2 + $0x78] sm:$0xf]
  %v49 = vld [vmem:[%s2 + $0x7c] sm:$0xf]
  %v51 = vunpack.c.l.b16 %v17
  %v52 = vunpack.c.h.b16 %v17
  %v53 = vpack.c.b16 %v51, %v51
  %v54 = vpack.c.b16 %v52, %v52
  %v89 = vunpack.c.l.b16 %v18
  %v90 = vunpack.c.l.b16 %v19
  %v91 = vunpack.c.l.b16 %v20
  %v92 = vunpack.c.l.b16 %v21
  %v93 = vunpack.c.l.b16 %v22
  %v94 = vunpack.c.l.b16 %v23
  %v95 = vunpack.c.l.b16 %v24
  %v96 = vunpack.c.l.b16 %v25
  %v97 = vunpack.c.l.b16 %v26
  %v98 = vunpack.c.l.b16 %v27
  %v99 = vunpack.c.l.b16 %v28
  %v100 = vunpack.c.l.b16 %v29
  %v101 = vunpack.c.l.b16 %v30
  %v102 = vunpack.c.l.b16 %v31
  %v103 = vunpack.c.l.b16 %v32
  %v104 = vunpack.c.l.b16 %v33
  %v105 = vunpack.c.l.b16 %v34
  %v106 = vunpack.c.l.b16 %v35
  %v107 = vunpack.c.l.b16 %v36
  %v108 = vunpack.c.l.b16 %v37
  %v109 = vunpack.c.l.b16 %v38
  %v110 = vunpack.c.l.b16 %v39
  %v111 = vunpack.c.l.b16 %v40
  %v112 = vunpack.c.l.b16 %v41
  %v113 = vunpack.c.l.b16 %v42
  %v114 = vunpack.c.l.b16 %v43
  %v115 = vunpack.c.l.b16 %v44
  %v116 = vunpack.c.l.b16 %v45
  %v117 = vunpack.c.l.b16 %v46
  %v118 = vunpack.c.l.b16 %v47
  %v119 = vunpack.c.l.b16 %v48
  %v120 = vunpack.c.l.b16 %v49
  %v121 = vpack.c.b16 %v90, %v89
  %v122 = vpack.c.b16 %v92, %v91
  %v123 = vpack.c.b16 %v94, %v93
  %v124 = vpack.c.b16 %v96, %v95
  %v125 = vpack.c.b16 %v98, %v97
  %v126 = vpack.c.b16 %v100, %v99
  %v127 = vpack.c.b16 %v102, %v101
  %v128 = vpack.c.b16 %v104, %v103
  %v129 = vpack.c.b16 %v106, %v105
  %v130 = vpack.c.b16 %v108, %v107
  %v131 = vpack.c.b16 %v110, %v109
  %v132 = vpack.c.b16 %v112, %v111
  %v133 = vpack.c.b16 %v114, %v113
  %v134 = vpack.c.b16 %v116, %v115
  %v135 = vpack.c.b16 %v118, %v117
  %v136 = vpack.c.b16 %v120, %v119
  %153 = vmatpush.bf16.msra.mxu0 %v128
  %154 = vmatpush.bf16.msra.mxu0 %v127
  %155 = vmatpush.bf16.msra.mxu0 %v126
  %156 = vmatpush.bf16.msra.mxu0 %v125
  %157 = vmatpush.bf16.msra.mxu0 %v124
  %158 = vmatpush.bf16.msra.mxu0 %v123
  %159 = vmatpush.bf16.msra.mxu0 %v122
  %160 = vmatpush.bf16.msra.mxu0 %v121
  %161 = vmatmul.bf16.gmra.mxu0 %v53
  %v162 = vpop.f32.mrf.mxu0
  %v163 = vadd.f32 0.0, %v162
  %v164 = vpop.f32.mrf.mxu0
  %165 = vdwg.mxu0
  %166 = vmatpush.bf16.msra.mxu0 %v136
  %167 = vmatpush.bf16.msra.mxu0 %v135
  %168 = vmatpush.bf16.msra.mxu0 %v134
  %169 = vmatpush.bf16.msra.mxu0 %v133
  %170 = vmatpush.bf16.msra.mxu0 %v132
  %171 = vmatpush.bf16.msra.mxu0 %v131
  %172 = vmatpush.bf16.msra.mxu0 %v130
  %173 = vmatpush.bf16.msra.mxu0 %v129
  %174 = vmatmul.bf16.gmra.mxu0 %v54
  %v175 = vpop.f32.mrf.mxu0
  %v176 = vadd.f32 %v163, %v175
  %v177 = vpop.f32.mrf.mxu0
  %178 = vdwg.mxu0
  %v179 = vld [vmem:[%s1] sm:$0xf]
  %v180 = vunpack.c.l.bf16 %v179
  %v181 = vmul.f32 %v176, %v180
  %v182 = vpack.c.bf16 %v181, %v181
  %v183 = vld [vmem:[%s3] sm:$0xff]
  %v184 = vld [vmem:[%s3 + $0x8] sm:$0xff]
  %v185 = vld [vmem:[%s3 + $0x10] sm:$0xff]
  %v186 = vld [vmem:[%s3 + $0x18] sm:$0xff]
  %v187 = vld [vmem:[%s3 + $0x20] sm:$0xff]
  %v188 = vld [vmem:[%s3 + $0x28] sm:$0xff]
  %v189 = vld [vmem:[%s3 + $0x30] sm:$0xff]
  %v190 = vld [vmem:[%s3 + $0x38] sm:$0xff]
  %v191 = vld [vmem:[%s3 + $0x40] sm:$0xff]
  %v192 = vld [vmem:[%s3 + $0x48] sm:$0xff]
  %v193 = vld [vmem:[%s3 + $0x50] sm:$0xff]
  %v194 = vld [vmem:[%s3 + $0x58] sm:$0xff]
  %v195 = vld [vmem:[%s3 + $0x60] sm:$0xff]
  %v196 = vld [vmem:[%s3 + $0x68] sm:$0xff]
  %v197 = vld [vmem:[%s3 + $0x70] sm:$0xff]
  %v198 = vld [vmem:[%s3 + $0x78] sm:$0xff]
  %v215 = vunpack.c.l.b16 %v183
  %v216 = vunpack.c.h.b16 %v183
  %v217 = vunpack.c.l.b16 %v184
  %v218 = vunpack.c.h.b16 %v184
  %v219 = vunpack.c.l.b16 %v185
  %v220 = vunpack.c.h.b16 %v185
  %v221 = vunpack.c.l.b16 %v186
  %v222 = vunpack.c.h.b16 %v186
  %v223 = vunpack.c.l.b16 %v187
  %v224 = vunpack.c.h.b16 %v187
  %v225 = vunpack.c.l.b16 %v188
  %v226 = vunpack.c.h.b16 %v188
  %v227 = vunpack.c.l.b16 %v189
  %v228 = vunpack.c.h.b16 %v189
  %v229 = vunpack.c.l.b16 %v190
  %v230 = vunpack.c.h.b16 %v190
  %v231 = vunpack.c.l.b16 %v191
  %v232 = vunpack.c.h.b16 %v191
  %v233 = vunpack.c.l.b16 %v192
  %v234 = vunpack.c.h.b16 %v192
  %v235 = vunpack.c.l.b16 %v193
  %v236 = vunpack.c.h.b16 %v193
  %v237 = vunpack.c.l.b16 %v194
  %v238 = vunpack.c.h.b16 %v194
  %v239 = vunpack.c.l.b16 %v195
  %v240 = vunpack.c.h.b16 %v195
  %v241 = vunpack.c.l.b16 %v196
  %v242 = vunpack.c.h.b16 %v196
  %v243 = vunpack.c.l.b16 %v197
  %v244 = vunpack.c.h.b16 %v197
  %v245 = vunpack.c.l.b16 %v198
  %v246 = vunpack.c.h.b16 %v198
  %v247 = vpack.c.b16 %v217, %v215
  %v248 = vpack.c.b16 %v218, %v216
  %v249 = vpack.c.b16 %v221, %v219
  %v250 = vpack.c.b16 %v222, %v220
  %v251 = vpack.c.b16 %v225, %v223
  %v252 = vpack.c.b16 %v226, %v224
  %v253 = vpack.c.b16 %v229, %v227
  %v254 = vpack.c.b16 %v230, %v228
  %v255 = vpack.c.b16 %v233, %v231
  %v256 = vpack.c.b16 %v234, %v232
  %v257 = vpack.c.b16 %v237, %v235
  %v258 = vpack.c.b16 %v238, %v236
  %v259 = vpack.c.b16 %v241, %v239
  %v260 = vpack.c.b16 %v242, %v240
  %v261 = vpack.c.b16 %v245, %v243
  %v262 = vpack.c.b16 %v246, %v244
  %279 = vmatpush.bf16.msra.mxu0 %v261
  %280 = vmatpush.bf16.msra.mxu0 %v259
  %281 = vmatpush.bf16.msra.mxu0 %v257
  %282 = vmatpush.bf16.msra.mxu0 %v255
  %283 = vmatpush.bf16.msra.mxu0 %v253
  %284 = vmatpush.bf16.msra.mxu0 %v251
  %285 = vmatpush.bf16.msra.mxu0 %v249
  %286 = vmatpush.bf16.msra.mxu0 %v247
  %287 = vmatmul.bf16.gmra.mxu0 %v182
  %v288 = vpop.f32.mrf.mxu0
  %v289 = vadd.f32 0.0, %v288
  %v290 = vpop.f32.mrf.mxu0
  %291 = vdwg.mxu0
  %292 = vmatpush.bf16.msra.mxu0 %v262
  %293 = vmatpush.bf16.msra.mxu0 %v260
  %294 = vmatpush.bf16.msra.mxu0 %v258
  %295 = vmatpush.bf16.msra.mxu0 %v256
  %296 = vmatpush.bf16.msra.mxu0 %v254
  %297 = vmatpush.bf16.msra.mxu0 %v252
  %298 = vmatpush.bf16.msra.mxu0 %v250
  %299 = vmatpush.bf16.msra.mxu0 %v248
  %300 = vmatmul.bf16.gmra.mxu0 %v182
  %v301 = vpop.f32.mrf.mxu0
  %v302 = vadd.f32 0.0, %v301
  %v303 = vpop.f32.mrf.mxu0
  %304 = vdwg.mxu0
  %305 = vst [vmem:[%s4] sm:$0xff] %v289
  %306 = vst [vmem:[%s4 + $0x8] sm:$0xff] %v302
  // Predicated region
  $region18: #{fourier_layer_2d.1} parent=0 // pred_check
    _
  $region19: #{fourier_layer_2d.1} parent=0 // pred_check_branch
    %308 = sbr.rel (0) target = $region21
  $region20: #{fourier_layer_2d.1} parent=0 // pred_region
    _
  $region21: #{fourier_layer_2d.1} parent=0 // pred_fallthru
    _
  // Predicated region
  $region22: #{fourier_layer_2d.1} parent=0 // pred_check
    _
  $region23: #{fourier_layer_2d.1} parent=0 // pred_check_branch
    %310 = sbr.rel (0) target = $region25
  $region24: #{fourier_layer_2d.1} parent=0 // pred_region
    _
  $region25: #{fourier_layer_2d.1} parent=0 // pred_fallthru
    _

</llo_original>
